<compile_context>
chip_gen: v7x
topology: tpu7x:2x2x1
jax: 0.10.0
libtpu: 0.0.40
codegen_flags: <defaults>
</compile_context>

<pallas_src>
import functools

import jax
import jax.numpy as jnp
from jax.experimental import pallas as pl
from jax.experimental.pallas import tpu as pltpu

BN_EPS = 1e-5
LANE = 128


def _round_up(n, m):
    return ((n + m - 1) // m) * m


def dnn_kernel(x_ref,
               w1_ref, g1_ref, be1_ref,
               wm_ref, gm_ref, bem_ref,
               w2_ref, g2_ref, be2_ref,
               w3_ref, b3_ref,
               out_ref):
    """Whole MLP fused into one kernel invocation (full batch resident)."""
    n = x_ref.shape[0]
    inv_n = jnp.float32(1.0 / n)

    def mm(lhs_f32, w_bf16_ref_val):
        # bf16 x bf16 -> f32 accumulation: native MXU path on v5e/v6e/v7x.
        return jnp.dot(lhs_f32.astype(jnp.bfloat16), w_bf16_ref_val,
                       preferred_element_type=jnp.float32)

    def bn_relu(h, gamma, beta):
        # One-pass training-mode (biased) batch stats, all in f32 (VPU/EUP
        # on v5e have no bf16), fused affine + ReLU.
        s = jnp.sum(h, axis=0, keepdims=True)
        ss = jnp.sum(h * h, axis=0, keepdims=True)
        mean = s * inv_n
        # Clamp: ss/n - mean^2 can round slightly negative for near-constant
        # features in f32, which would poison rsqrt.
        var = jnp.maximum(ss * inv_n - mean * mean, 0.0)
        a = gamma * jax.lax.rsqrt(var + BN_EPS)
        c = beta - mean * a
        return jnp.maximum(h * a + c, 0.0)

    # liner_1: Linear(dim -> hid_1) [bias folded into BN] + BN + ReLU
    h = bn_relu(mm(x_ref[...], w1_ref[...]), g1_ref[...], be1_ref[...])

    # liner_list: 5 x (Linear(hid_1 -> hid_1) [bias folded] + BN + ReLU)
    for i in range(5):
        h = bn_relu(mm(h, wm_ref[i]), gm_ref[i], bem_ref[i])

    # liner_2: Linear(hid_1 -> dim) [bias folded] + BN + ReLU
    h = bn_relu(mm(h, w2_ref[...]), g2_ref[...], be2_ref[...])

    # liner_3: Linear(dim -> d_output), bias kept (no BN after it).
    # Output feature dim is pre-padded to 128 -> lane-dense unmasked stores.
    out_ref[...] = mm(h, w3_ref[...]) + b3_ref[...]


def make_params(key, dim, hid_1, d_output):
    """Deterministic synthetic parameters (weights already (in, out))."""
    keys = jax.random.split(key, 16)
    p = {}
    p["w1"] = 0.1 * jax.random.normal(keys[0], (dim, hid_1), jnp.float32)
    p["b1"] = 0.01 * jax.random.normal(keys[1], (1, hid_1), jnp.float32)
    p["g1"] = 1.0 + 0.05 * jax.random.normal(keys[2], (1, hid_1), jnp.float32)
    p["be1"] = 0.01 * jax.random.normal(keys[3], (1, hid_1), jnp.float32)

    p["wm"] = 0.1 * jax.random.normal(keys[4], (5, hid_1, hid_1), jnp.float32)
    p["bm"] = 0.01 * jax.random.normal(keys[5], (5, 1, hid_1), jnp.float32)
    p["gm"] = 1.0 + 0.05 * jax.random.normal(keys[6], (5, 1, hid_1), jnp.float32)
    p["bem"] = 0.01 * jax.random.normal(keys[7], (5, 1, hid_1), jnp.float32)

    p["w2"] = 0.1 * jax.random.normal(keys[8], (hid_1, dim), jnp.float32)
    p["b2"] = 0.01 * jax.random.normal(keys[9], (1, dim), jnp.float32)
    p["g2"] = 1.0 + 0.05 * jax.random.normal(keys[10], (1, dim), jnp.float32)
    p["be2"] = 0.01 * jax.random.normal(keys[11], (1, dim), jnp.float32)

    p["w3"] = 0.1 * jax.random.normal(keys[12], (dim, d_output), jnp.float32)
    p["b3"] = 0.01 * jax.random.normal(keys[13], (1, d_output), jnp.float32)
    return p


def prepare_params(params, d_output):
    """ONE-TIME prep (hoisted out of the forward path):
      * cast matmul weights to bf16,
      * pad ONLY the final output feature dim to a lane-dense multiple of 128,
      * drop biases that feed a BatchNorm (cancelled by mean subtraction),
      * keep BN affine params and the final bias in f32.
    Contraction/hidden dims stay unpadded in HBM (no useless DMA bytes)."""
    op = _round_up(d_output, LANE)
    pad_out = ((0, 0), (0, op - d_output))
    return dict(
        w1=params["w1"].astype(jnp.bfloat16),
        g1=params["g1"], be1=params["be1"],
        wm=params["wm"].astype(jnp.bfloat16),
        gm=params["gm"], bem=params["bem"],
        w2=params["w2"].astype(jnp.bfloat16),
        g2=params["g2"], be2=params["be2"],
        w3=jnp.pad(params["w3"], pad_out).astype(jnp.bfloat16),
        b3=jnp.pad(params["b3"], pad_out),  # f32 (added post-matmul in f32)
    )


def _vmem_limit_bytes(footprint_bytes):
    """Footprint-aware VMEM request with headroom; capped at 3/4 of physical
    per-core VMEM (64 MiB on v7x, 128 MiB on v5e/v6e) so we never claim the
    whole thing."""
    try:
        phys = getattr(pltpu.get_tpu_info(), "vmem_capacity_bytes",
                       64 * 1024 * 1024)
    except Exception:  # non-TPU trace / missing query: assume smallest (v7x)
        phys = 64 * 1024 * 1024
    limit = 4 * footprint_bytes + (4 << 20)
    return int(min(max(limit, 8 << 20), (3 * phys) // 4))


@functools.partial(jax.jit, static_argnames=("d_output",))
def dnn_forward(x, prepped, *, d_output):
    n, dim = x.shape
    hid = prepped["w1"].shape[1]
    op = prepped["w3"].shape[1]

    flat = (prepped["w1"], prepped["g1"], prepped["be1"],
            prepped["wm"], prepped["gm"], prepped["bem"],
            prepped["w2"], prepped["g2"], prepped["be2"],
            prepped["w3"], prepped["b3"])

    # Advisory cost info for XLA's scheduler.
    matmul_flops = 2 * n * (dim * hid + 5 * hid * hid + hid * dim + dim * op)
    bn_flops = 8 * n * (6 * hid + dim)
    io_bytes = (x.size * x.dtype.itemsize
                + sum(a.size * a.dtype.itemsize for a in flat)
                + n * op * 4)
    cost = pl.CostEstimate(
        flops=int(matmul_flops + bn_flops),
        transcendentals=int(6 * hid + dim),       # one rsqrt per BN feature
        bytes_accessed=int(io_bytes))

    # Rough working-set: I/O + a few f32 activation slabs.
    footprint = int(io_bytes + 4 * n * max(hid, dim, op) * 4)

    # TODO(synk): with N=8 the MXU rows are ~94-97% empty; batch-tile to
    # >=128 rows per matmul (grid + cross-tile BN stats) for real workloads.
    vmem = pl.BlockSpec(memory_space=pltpu.MemorySpace.VMEM)
    out_padded = pl.pallas_call(
        dnn_kernel,
        out_shape=jax.ShapeDtypeStruct((n, op), jnp.float32),
        in_specs=[vmem] * (1 + len(flat)),
        out_specs=vmem,
        compiler_params=pltpu.CompilerParams(
            vmem_limit_bytes=_vmem_limit_bytes(footprint)),
        cost_estimate=cost,
    )(x, *flat)
    return out_padded[:, :d_output]


def dnn_reference(x, params):
    """Pure-JAX f32 reference with the ORIGINAL semantics (biases included,
    two-pass BN statistics) to validate the algebraic simplifications."""
    def bn_relu(h, g, b):
        m = jnp.mean(h, axis=0, keepdims=True)
        v = jnp.mean(jnp.square(h - m), axis=0, keepdims=True)
        return jnp.maximum((h - m) * jax.lax.rsqrt(v + BN_EPS) * g + b, 0.0)

    h = bn_relu(x @ params["w1"] + params["b1"], params["g1"], params["be1"])
    for i in range(5):
        h = bn_relu(h @ params["wm"][i] + params["bm"][i],
                    params["gm"][i], params["bem"][i])
    h = bn_relu(h @ params["w2"] + params["b2"], params["g2"], params["be2"])
    return h @ params["w3"] + params["b3"]


if __name__ == "__main__":
    # Small shapes consistent with the module: batch=8, dim=16, hid_1=32, d_output=4
    N, DIM, HID, OUT = 8, 16, 32, 4
    key = jax.random.PRNGKey(0)
    k_x, k_p = jax.random.split(key)
    x = jax.random.normal(k_x, (N, DIM), jnp.float32)
    params = make_params(k_p, DIM, HID, OUT)

    prepped = prepare_params(params, OUT)          # one-time (not per call)
    out = dnn_forward(x, prepped, d_output=OUT)
    out = jax.block_until_ready(out)

    ref = dnn_reference(x, params)
    assert out.shape == (N, OUT)
    # bf16 matmul inputs (f32 accumulation / f32 BN) -> looser tolerance vs
    # the pure-f32 reference.
    assert jnp.allclose(out, ref, atol=5e-2, rtol=5e-2), "mismatch vs reference"
    print("KERNEL_OK")
</pallas_src>

<mosaic_0001>
module attributes {stable_mosaic.version = 11 : i64} {
  func.func @dnn_kernel(%arg0: memref<8x16xf32, #tpu.memory_space<vmem>>, %arg1: memref<16x32xbf16, #tpu.memory_space<vmem>>, %arg2: memref<1x32xf32, #tpu.memory_space<vmem>>, %arg3: memref<1x32xf32, #tpu.memory_space<vmem>>, %arg4: memref<5x32x32xbf16, #tpu.memory_space<vmem>>, %arg5: memref<5x1x32xf32, #tpu.memory_space<vmem>>, %arg6: memref<5x1x32xf32, #tpu.memory_space<vmem>>, %arg7: memref<32x16xbf16, #tpu.memory_space<vmem>>, %arg8: memref<1x16xf32, #tpu.memory_space<vmem>>, %arg9: memref<1x16xf32, #tpu.memory_space<vmem>>, %arg10: memref<16x128xbf16, #tpu.memory_space<vmem>>, %arg11: memref<1x128xf32, #tpu.memory_space<vmem>>, %arg12: memref<8x128xf32, #tpu.memory_space<vmem>>) attributes {dimension_semantics = [], scalar_prefetch = 0 : i64, scratch_operands = 0 : i64, tpu.core_type = #tpu.core_type<tc>} {
    %c0 = arith.constant 0 : index
    %c0_0 = arith.constant 0 : index
    %0 = vector.load %arg0[%c0, %c0_0] : memref<8x16xf32, #tpu.memory_space<vmem>>, vector<8x16xf32>
    %c0_1 = arith.constant 0 : index
    %c0_2 = arith.constant 0 : index
    %1 = vector.load %arg1[%c0_1, %c0_2] : memref<16x32xbf16, #tpu.memory_space<vmem>>, vector<16x32xbf16>
    %2 = arith.truncf %0 : vector<8x16xf32> to vector<8x16xbf16>
    %cst = arith.constant dense<0.000000e+00> : vector<8x32xf32>
    %3 = tpu.matmul %2, %1, %cst {dimension_numbers = #tpu.dot_dimension_numbers<[1], [0], [0], [1], [0, 0, 1, 1], [], []>} : vector<8x16xbf16>, vector<16x32xbf16>, vector<8x32xf32> -> vector<8x32xf32>
    %c0_3 = arith.constant 0 : index
    %c0_4 = arith.constant 0 : index
    %4 = vector.load %arg2[%c0_3, %c0_4] : memref<1x32xf32, #tpu.memory_space<vmem>>, vector<1x32xf32>
    %c0_5 = arith.constant 0 : index
    %c0_6 = arith.constant 0 : index
    %5 = vector.load %arg3[%c0_5, %c0_6] : memref<1x32xf32, #tpu.memory_space<vmem>>, vector<1x32xf32>
    %cst_7 = arith.constant dense<0.000000e+00> : vector<32xf32>
    %6 = vector.multi_reduction <add>, %3, %cst_7 [0] : vector<8x32xf32> to vector<32xf32>
    %7 = vector.shape_cast %6 : vector<32xf32> to vector<1x32xf32>
    %8 = arith.mulf %3, %3 : vector<8x32xf32>
    %cst_8 = arith.constant dense<0.000000e+00> : vector<32xf32>
    %9 = vector.multi_reduction <add>, %8, %cst_8 [0] : vector<8x32xf32> to vector<32xf32>
    %10 = vector.shape_cast %9 : vector<32xf32> to vector<1x32xf32>
    %cst_9 = arith.constant 1.250000e-01 : f32
    %11 = vector.broadcast %cst_9 : f32 to vector<1x32xf32>
    %12 = arith.mulf %7, %11 : vector<1x32xf32>
    %cst_10 = arith.constant 1.250000e-01 : f32
    %13 = vector.broadcast %cst_10 : f32 to vector<1x32xf32>
    %14 = arith.mulf %10, %13 : vector<1x32xf32>
    %15 = arith.mulf %12, %12 : vector<1x32xf32>
    %16 = arith.subf %14, %15 : vector<1x32xf32>
    %cst_11 = arith.constant 0.000000e+00 : f32
    %17 = vector.broadcast %cst_11 : f32 to vector<1x32xf32>
    %18 = arith.maximumf %16, %17 : vector<1x32xf32>
    %cst_12 = arith.constant 9.99999974E-6 : f32
    %19 = vector.broadcast %cst_12 : f32 to vector<1x32xf32>
    %20 = arith.addf %18, %19 : vector<1x32xf32>
    %21 = math.rsqrt %20 : vector<1x32xf32>
    %22 = arith.mulf %4, %21 : vector<1x32xf32>
    %23 = arith.mulf %12, %22 : vector<1x32xf32>
    %24 = arith.subf %5, %23 : vector<1x32xf32>
    %25 = vector.broadcast %22 : vector<1x32xf32> to vector<8x32xf32>
    %26 = arith.mulf %3, %25 : vector<8x32xf32>
    %27 = vector.broadcast %24 : vector<1x32xf32> to vector<8x32xf32>
    %28 = arith.addf %26, %27 : vector<8x32xf32>
    %cst_13 = arith.constant 0.000000e+00 : f32
    %29 = vector.broadcast %cst_13 : f32 to vector<8x32xf32>
    %30 = arith.maximumf %28, %29 : vector<8x32xf32>
    %c0_14 = arith.constant 0 : index
    %c0_15 = arith.constant 0 : index
    %c0_16 = arith.constant 0 : index
    %31 = vector.load %arg4[%c0_14, %c0_15, %c0_16] : memref<5x32x32xbf16, #tpu.memory_space<vmem>>, vector<1x32x32xbf16>
    %32 = vector.shape_cast %31 : vector<1x32x32xbf16> to vector<32x32xbf16>
    %33 = arith.truncf %30 : vector<8x32xf32> to vector<8x32xbf16>
    %cst_17 = arith.constant dense<0.000000e+00> : vector<8x32xf32>
    %34 = tpu.matmul %33, %32, %cst_17 {dimension_numbers = #tpu.dot_dimension_numbers<[1], [0], [0], [1], [0, 0, 1, 1], [], []>} : vector<8x32xbf16>, vector<32x32xbf16>, vector<8x32xf32> -> vector<8x32xf32>
    %c0_18 = arith.constant 0 : index
    %c0_19 = arith.constant 0 : index
    %c0_20 = arith.constant 0 : index
    %35 = vector.load %arg5[%c0_18, %c0_19, %c0_20] : memref<5x1x32xf32, #tpu.memory_space<vmem>>, vector<1x1x32xf32>
    %36 = vector.shape_cast %35 : vector<1x1x32xf32> to vector<1x32xf32>
    %c0_21 = arith.constant 0 : index
    %c0_22 = arith.constant 0 : index
    %c0_23 = arith.constant 0 : index
    %37 = vector.load %arg6[%c0_21, %c0_22, %c0_23] : memref<5x1x32xf32, #tpu.memory_space<vmem>>, vector<1x1x32xf32>
    %38 = vector.shape_cast %37 : vector<1x1x32xf32> to vector<1x32xf32>
    %cst_24 = arith.constant dense<0.000000e+00> : vector<32xf32>
    %39 = vector.multi_reduction <add>, %34, %cst_24 [0] : vector<8x32xf32> to vector<32xf32>
    %40 = vector.shape_cast %39 : vector<32xf32> to vector<1x32xf32>
    %41 = arith.mulf %34, %34 : vector<8x32xf32>
    %cst_25 = arith.constant dense<0.000000e+00> : vector<32xf32>
    %42 = vector.multi_reduction <add>, %41, %cst_25 [0] : vector<8x32xf32> to vector<32xf32>
    %43 = vector.shape_cast %42 : vector<32xf32> to vector<1x32xf32>
    %cst_26 = arith.constant 1.250000e-01 : f32
    %44 = vector.broadcast %cst_26 : f32 to vector<1x32xf32>
    %45 = arith.mulf %40, %44 : vector<1x32xf32>
    %cst_27 = arith.constant 1.250000e-01 : f32
    %46 = vector.broadcast %cst_27 : f32 to vector<1x32xf32>
    %47 = arith.mulf %43, %46 : vector<1x32xf32>
    %48 = arith.mulf %45, %45 : vector<1x32xf32>
    %49 = arith.subf %47, %48 : vector<1x32xf32>
    %cst_28 = arith.constant 0.000000e+00 : f32
    %50 = vector.broadcast %cst_28 : f32 to vector<1x32xf32>
    %51 = arith.maximumf %49, %50 : vector<1x32xf32>
    %cst_29 = arith.constant 9.99999974E-6 : f32
    %52 = vector.broadcast %cst_29 : f32 to vector<1x32xf32>
    %53 = arith.addf %51, %52 : vector<1x32xf32>
    %54 = math.rsqrt %53 : vector<1x32xf32>
    %55 = arith.mulf %36, %54 : vector<1x32xf32>
    %56 = arith.mulf %45, %55 : vector<1x32xf32>
    %57 = arith.subf %38, %56 : vector<1x32xf32>
    %58 = vector.broadcast %55 : vector<1x32xf32> to vector<8x32xf32>
    %59 = arith.mulf %34, %58 : vector<8x32xf32>
    %60 = vector.broadcast %57 : vector<1x32xf32> to vector<8x32xf32>
    %61 = arith.addf %59, %60 : vector<8x32xf32>
    %cst_30 = arith.constant 0.000000e+00 : f32
    %62 = vector.broadcast %cst_30 : f32 to vector<8x32xf32>
    %63 = arith.maximumf %61, %62 : vector<8x32xf32>
    %c1 = arith.constant 1 : index
    %c0_31 = arith.constant 0 : index
    %c0_32 = arith.constant 0 : index
    %64 = vector.load %arg4[%c1, %c0_31, %c0_32] : memref<5x32x32xbf16, #tpu.memory_space<vmem>>, vector<1x32x32xbf16>
    %65 = vector.shape_cast %64 : vector<1x32x32xbf16> to vector<32x32xbf16>
    %66 = arith.truncf %63 : vector<8x32xf32> to vector<8x32xbf16>
    %cst_33 = arith.constant dense<0.000000e+00> : vector<8x32xf32>
    %67 = tpu.matmul %66, %65, %cst_33 {dimension_numbers = #tpu.dot_dimension_numbers<[1], [0], [0], [1], [0, 0, 1, 1], [], []>} : vector<8x32xbf16>, vector<32x32xbf16>, vector<8x32xf32> -> vector<8x32xf32>
    %c1_34 = arith.constant 1 : index
    %c0_35 = arith.constant 0 : index
    %c0_36 = arith.constant 0 : index
    %68 = vector.load %arg5[%c1_34, %c0_35, %c0_36] : memref<5x1x32xf32, #tpu.memory_space<vmem>>, vector<1x1x32xf32>
    %69 = vector.shape_cast %68 : vector<1x1x32xf32> to vector<1x32xf32>
    %c1_37 = arith.constant 1 : index
    %c0_38 = arith.constant 0 : index
    %c0_39 = arith.constant 0 : index
    %70 = vector.load %arg6[%c1_37, %c0_38, %c0_39] : memref<5x1x32xf32, #tpu.memory_space<vmem>>, vector<1x1x32xf32>
    %71 = vector.shape_cast %70 : vector<1x1x32xf32> to vector<1x32xf32>
    %cst_40 = arith.constant dense<0.000000e+00> : vector<32xf32>
    %72 = vector.multi_reduction <add>, %67, %cst_40 [0] : vector<8x32xf32> to vector<32xf32>
    %73 = vector.shape_cast %72 : vector<32xf32> to vector<1x32xf32>
    %74 = arith.mulf %67, %67 : vector<8x32xf32>
    %cst_41 = arith.constant dense<0.000000e+00> : vector<32xf32>
    %75 = vector.multi_reduction <add>, %74, %cst_41 [0] : vector<8x32xf32> to vector<32xf32>
    %76 = vector.shape_cast %75 : vector<32xf32> to vector<1x32xf32>
    %cst_42 = arith.constant 1.250000e-01 : f32
    %77 = vector.broadcast %cst_42 : f32 to vector<1x32xf32>
    %78 = arith.mulf %73, %77 : vector<1x32xf32>
    %cst_43 = arith.constant 1.250000e-01 : f32
    %79 = vector.broadcast %cst_43 : f32 to vector<1x32xf32>
    %80 = arith.mulf %76, %79 : vector<1x32xf32>
    %81 = arith.mulf %78, %78 : vector<1x32xf32>
    %82 = arith.subf %80, %81 : vector<1x32xf32>
    %cst_44 = arith.constant 0.000000e+00 : f32
    %83 = vector.broadcast %cst_44 : f32 to vector<1x32xf32>
    %84 = arith.maximumf %82, %83 : vector<1x32xf32>
    %cst_45 = arith.constant 9.99999974E-6 : f32
    %85 = vector.broadcast %cst_45 : f32 to vector<1x32xf32>
    %86 = arith.addf %84, %85 : vector<1x32xf32>
    %87 = math.rsqrt %86 : vector<1x32xf32>
    %88 = arith.mulf %69, %87 : vector<1x32xf32>
    %89 = arith.mulf %78, %88 : vector<1x32xf32>
    %90 = arith.subf %71, %89 : vector<1x32xf32>
    %91 = vector.broadcast %88 : vector<1x32xf32> to vector<8x32xf32>
    %92 = arith.mulf %67, %91 : vector<8x32xf32>
    %93 = vector.broadcast %90 : vector<1x32xf32> to vector<8x32xf32>
    %94 = arith.addf %92, %93 : vector<8x32xf32>
    %cst_46 = arith.constant 0.000000e+00 : f32
    %95 = vector.broadcast %cst_46 : f32 to vector<8x32xf32>
    %96 = arith.maximumf %94, %95 : vector<8x32xf32>
    %c2 = arith.constant 2 : index
    %c0_47 = arith.constant 0 : index
    %c0_48 = arith.constant 0 : index
    %97 = vector.load %arg4[%c2, %c0_47, %c0_48] : memref<5x32x32xbf16, #tpu.memory_space<vmem>>, vector<1x32x32xbf16>
    %98 = vector.shape_cast %97 : vector<1x32x32xbf16> to vector<32x32xbf16>
    %99 = arith.truncf %96 : vector<8x32xf32> to vector<8x32xbf16>
    %cst_49 = arith.constant dense<0.000000e+00> : vector<8x32xf32>
    %100 = tpu.matmul %99, %98, %cst_49 {dimension_numbers = #tpu.dot_dimension_numbers<[1], [0], [0], [1], [0, 0, 1, 1], [], []>} : vector<8x32xbf16>, vector<32x32xbf16>, vector<8x32xf32> -> vector<8x32xf32>
    %c2_50 = arith.constant 2 : index
    %c0_51 = arith.constant 0 : index
    %c0_52 = arith.constant 0 : index
    %101 = vector.load %arg5[%c2_50, %c0_51, %c0_52] : memref<5x1x32xf32, #tpu.memory_space<vmem>>, vector<1x1x32xf32>
    %102 = vector.shape_cast %101 : vector<1x1x32xf32> to vector<1x32xf32>
    %c2_53 = arith.constant 2 : index
    %c0_54 = arith.constant 0 : index
    %c0_55 = arith.constant 0 : index
    %103 = vector.load %arg6[%c2_53, %c0_54, %c0_55] : memref<5x1x32xf32, #tpu.memory_space<vmem>>, vector<1x1x32xf32>
    %104 = vector.shape_cast %103 : vector<1x1x32xf32> to vector<1x32xf32>
    %cst_56 = arith.constant dense<0.000000e+00> : vector<32xf32>
    %105 = vector.multi_reduction <add>, %100, %cst_56 [0] : vector<8x32xf32> to vector<32xf32>
    %106 = vector.shape_cast %105 : vector<32xf32> to vector<1x32xf32>
    %107 = arith.mulf %100, %100 : vector<8x32xf32>
    %cst_57 = arith.constant dense<0.000000e+00> : vector<32xf32>
    %108 = vector.multi_reduction <add>, %107, %cst_57 [0] : vector<8x32xf32> to vector<32xf32>
    %109 = vector.shape_cast %108 : vector<32xf32> to vector<1x32xf32>
    %cst_58 = arith.constant 1.250000e-01 : f32
    %110 = vector.broadcast %cst_58 : f32 to vector<1x32xf32>
    %111 = arith.mulf %106, %110 : vector<1x32xf32>
    %cst_59 = arith.constant 1.250000e-01 : f32
    %112 = vector.broadcast %cst_59 : f32 to vector<1x32xf32>
    %113 = arith.mulf %109, %112 : vector<1x32xf32>
    %114 = arith.mulf %111, %111 : vector<1x32xf32>
    %115 = arith.subf %113, %114 : vector<1x32xf32>
    %cst_60 = arith.constant 0.000000e+00 : f32
    %116 = vector.broadcast %cst_60 : f32 to vector<1x32xf32>
    %117 = arith.maximumf %115, %116 : vector<1x32xf32>
    %cst_61 = arith.constant 9.99999974E-6 : f32
    %118 = vector.broadcast %cst_61 : f32 to vector<1x32xf32>
    %119 = arith.addf %117, %118 : vector<1x32xf32>
    %120 = math.rsqrt %119 : vector<1x32xf32>
    %121 = arith.mulf %102, %120 : vector<1x32xf32>
    %122 = arith.mulf %111, %121 : vector<1x32xf32>
    %123 = arith.subf %104, %122 : vector<1x32xf32>
    %124 = vector.broadcast %121 : vector<1x32xf32> to vector<8x32xf32>
    %125 = arith.mulf %100, %124 : vector<8x32xf32>
    %126 = vector.broadcast %123 : vector<1x32xf32> to vector<8x32xf32>
    %127 = arith.addf %125, %126 : vector<8x32xf32>
    %cst_62 = arith.constant 0.000000e+00 : f32
    %128 = vector.broadcast %cst_62 : f32 to vector<8x32xf32>
    %129 = arith.maximumf %127, %128 : vector<8x32xf32>
    %c3 = arith.constant 3 : index
    %c0_63 = arith.constant 0 : index
    %c0_64 = arith.constant 0 : index
    %130 = vector.load %arg4[%c3, %c0_63, %c0_64] : memref<5x32x32xbf16, #tpu.memory_space<vmem>>, vector<1x32x32xbf16>
    %131 = vector.shape_cast %130 : vector<1x32x32xbf16> to vector<32x32xbf16>
    %132 = arith.truncf %129 : vector<8x32xf32> to vector<8x32xbf16>
    %cst_65 = arith.constant dense<0.000000e+00> : vector<8x32xf32>
    %133 = tpu.matmul %132, %131, %cst_65 {dimension_numbers = #tpu.dot_dimension_numbers<[1], [0], [0], [1], [0, 0, 1, 1], [], []>} : vector<8x32xbf16>, vector<32x32xbf16>, vector<8x32xf32> -> vector<8x32xf32>
    %c3_66 = arith.constant 3 : index
    %c0_67 = arith.constant 0 : index
    %c0_68 = arith.constant 0 : index
    %134 = vector.load %arg5[%c3_66, %c0_67, %c0_68] : memref<5x1x32xf32, #tpu.memory_space<vmem>>, vector<1x1x32xf32>
    %135 = vector.shape_cast %134 : vector<1x1x32xf32> to vector<1x32xf32>
    %c3_69 = arith.constant 3 : index
    %c0_70 = arith.constant 0 : index
    %c0_71 = arith.constant 0 : index
    %136 = vector.load %arg6[%c3_69, %c0_70, %c0_71] : memref<5x1x32xf32, #tpu.memory_space<vmem>>, vector<1x1x32xf32>
    %137 = vector.shape_cast %136 : vector<1x1x32xf32> to vector<1x32xf32>
    %cst_72 = arith.constant dense<0.000000e+00> : vector<32xf32>
    %138 = vector.multi_reduction <add>, %133, %cst_72 [0] : vector<8x32xf32> to vector<32xf32>
    %139 = vector.shape_cast %138 : vector<32xf32> to vector<1x32xf32>
    %140 = arith.mulf %133, %133 : vector<8x32xf32>
    %cst_73 = arith.constant dense<0.000000e+00> : vector<32xf32>
    %141 = vector.multi_reduction <add>, %140, %cst_73 [0] : vector<8x32xf32> to vector<32xf32>
    %142 = vector.shape_cast %141 : vector<32xf32> to vector<1x32xf32>
    %cst_74 = arith.constant 1.250000e-01 : f32
    %143 = vector.broadcast %cst_74 : f32 to vector<1x32xf32>
    %144 = arith.mulf %139, %143 : vector<1x32xf32>
    %cst_75 = arith.constant 1.250000e-01 : f32
    %145 = vector.broadcast %cst_75 : f32 to vector<1x32xf32>
    %146 = arith.mulf %142, %145 : vector<1x32xf32>
    %147 = arith.mulf %144, %144 : vector<1x32xf32>
    %148 = arith.subf %146, %147 : vector<1x32xf32>
    %cst_76 = arith.constant 0.000000e+00 : f32
    %149 = vector.broadcast %cst_76 : f32 to vector<1x32xf32>
    %150 = arith.maximumf %148, %149 : vector<1x32xf32>
    %cst_77 = arith.constant 9.99999974E-6 : f32
    %151 = vector.broadcast %cst_77 : f32 to vector<1x32xf32>
    %152 = arith.addf %150, %151 : vector<1x32xf32>
    %153 = math.rsqrt %152 : vector<1x32xf32>
    %154 = arith.mulf %135, %153 : vector<1x32xf32>
    %155 = arith.mulf %144, %154 : vector<1x32xf32>
    %156 = arith.subf %137, %155 : vector<1x32xf32>
    %157 = vector.broadcast %154 : vector<1x32xf32> to vector<8x32xf32>
    %158 = arith.mulf %133, %157 : vector<8x32xf32>
    %159 = vector.broadcast %156 : vector<1x32xf32> to vector<8x32xf32>
    %160 = arith.addf %158, %159 : vector<8x32xf32>
    %cst_78 = arith.constant 0.000000e+00 : f32
    %161 = vector.broadcast %cst_78 : f32 to vector<8x32xf32>
    %162 = arith.maximumf %160, %161 : vector<8x32xf32>
    %c4 = arith.constant 4 : index
    %c0_79 = arith.constant 0 : index
    %c0_80 = arith.constant 0 : index
    %163 = vector.load %arg4[%c4, %c0_79, %c0_80] : memref<5x32x32xbf16, #tpu.memory_space<vmem>>, vector<1x32x32xbf16>
    %164 = vector.shape_cast %163 : vector<1x32x32xbf16> to vector<32x32xbf16>
    %165 = arith.truncf %162 : vector<8x32xf32> to vector<8x32xbf16>
    %cst_81 = arith.constant dense<0.000000e+00> : vector<8x32xf32>
    %166 = tpu.matmul %165, %164, %cst_81 {dimension_numbers = #tpu.dot_dimension_numbers<[1], [0], [0], [1], [0, 0, 1, 1], [], []>} : vector<8x32xbf16>, vector<32x32xbf16>, vector<8x32xf32> -> vector<8x32xf32>
    %c4_82 = arith.constant 4 : index
    %c0_83 = arith.constant 0 : index
    %c0_84 = arith.constant 0 : index
    %167 = vector.load %arg5[%c4_82, %c0_83, %c0_84] : memref<5x1x32xf32, #tpu.memory_space<vmem>>, vector<1x1x32xf32>
    %168 = vector.shape_cast %167 : vector<1x1x32xf32> to vector<1x32xf32>
    %c4_85 = arith.constant 4 : index
    %c0_86 = arith.constant 0 : index
    %c0_87 = arith.constant 0 : index
    %169 = vector.load %arg6[%c4_85, %c0_86, %c0_87] : memref<5x1x32xf32, #tpu.memory_space<vmem>>, vector<1x1x32xf32>
    %170 = vector.shape_cast %169 : vector<1x1x32xf32> to vector<1x32xf32>
    %cst_88 = arith.constant dense<0.000000e+00> : vector<32xf32>
    %171 = vector.multi_reduction <add>, %166, %cst_88 [0] : vector<8x32xf32> to vector<32xf32>
    %172 = vector.shape_cast %171 : vector<32xf32> to vector<1x32xf32>
    %173 = arith.mulf %166, %166 : vector<8x32xf32>
    %cst_89 = arith.constant dense<0.000000e+00> : vector<32xf32>
    %174 = vector.multi_reduction <add>, %173, %cst_89 [0] : vector<8x32xf32> to vector<32xf32>
    %175 = vector.shape_cast %174 : vector<32xf32> to vector<1x32xf32>
    %cst_90 = arith.constant 1.250000e-01 : f32
    %176 = vector.broadcast %cst_90 : f32 to vector<1x32xf32>
    %177 = arith.mulf %172, %176 : vector<1x32xf32>
    %cst_91 = arith.constant 1.250000e-01 : f32
    %178 = vector.broadcast %cst_91 : f32 to vector<1x32xf32>
    %179 = arith.mulf %175, %178 : vector<1x32xf32>
    %180 = arith.mulf %177, %177 : vector<1x32xf32>
    %181 = arith.subf %179, %180 : vector<1x32xf32>
    %cst_92 = arith.constant 0.000000e+00 : f32
    %182 = vector.broadcast %cst_92 : f32 to vector<1x32xf32>
    %183 = arith.maximumf %181, %182 : vector<1x32xf32>
    %cst_93 = arith.constant 9.99999974E-6 : f32
    %184 = vector.broadcast %cst_93 : f32 to vector<1x32xf32>
    %185 = arith.addf %183, %184 : vector<1x32xf32>
    %186 = math.rsqrt %185 : vector<1x32xf32>
    %187 = arith.mulf %168, %186 : vector<1x32xf32>
    %188 = arith.mulf %177, %187 : vector<1x32xf32>
    %189 = arith.subf %170, %188 : vector<1x32xf32>
    %190 = vector.broadcast %187 : vector<1x32xf32> to vector<8x32xf32>
    %191 = arith.mulf %166, %190 : vector<8x32xf32>
    %192 = vector.broadcast %189 : vector<1x32xf32> to vector<8x32xf32>
    %193 = arith.addf %191, %192 : vector<8x32xf32>
    %cst_94 = arith.constant 0.000000e+00 : f32
    %194 = vector.broadcast %cst_94 : f32 to vector<8x32xf32>
    %195 = arith.maximumf %193, %194 : vector<8x32xf32>
    %c0_95 = arith.constant 0 : index
    %c0_96 = arith.constant 0 : index
    %196 = vector.load %arg7[%c0_95, %c0_96] : memref<32x16xbf16, #tpu.memory_space<vmem>>, vector<32x16xbf16>
    %197 = arith.truncf %195 : vector<8x32xf32> to vector<8x32xbf16>
    %cst_97 = arith.constant dense<0.000000e+00> : vector<8x16xf32>
    %198 = tpu.matmul %197, %196, %cst_97 {dimension_numbers = #tpu.dot_dimension_numbers<[1], [0], [0], [1], [0, 0, 1, 1], [], []>} : vector<8x32xbf16>, vector<32x16xbf16>, vector<8x16xf32> -> vector<8x16xf32>
    %c0_98 = arith.constant 0 : index
    %c0_99 = arith.constant 0 : index
    %199 = vector.load %arg8[%c0_98, %c0_99] : memref<1x16xf32, #tpu.memory_space<vmem>>, vector<1x16xf32>
    %c0_100 = arith.constant 0 : index
    %c0_101 = arith.constant 0 : index
    %200 = vector.load %arg9[%c0_100, %c0_101] : memref<1x16xf32, #tpu.memory_space<vmem>>, vector<1x16xf32>
    %cst_102 = arith.constant dense<0.000000e+00> : vector<16xf32>
    %201 = vector.multi_reduction <add>, %198, %cst_102 [0] : vector<8x16xf32> to vector<16xf32>
    %202 = vector.shape_cast %201 : vector<16xf32> to vector<1x16xf32>
    %203 = arith.mulf %198, %198 : vector<8x16xf32>
    %cst_103 = arith.constant dense<0.000000e+00> : vector<16xf32>
    %204 = vector.multi_reduction <add>, %203, %cst_103 [0] : vector<8x16xf32> to vector<16xf32>
    %205 = vector.shape_cast %204 : vector<16xf32> to vector<1x16xf32>
    %cst_104 = arith.constant 1.250000e-01 : f32
    %206 = vector.broadcast %cst_104 : f32 to vector<1x16xf32>
    %207 = arith.mulf %202, %206 : vector<1x16xf32>
    %cst_105 = arith.constant 1.250000e-01 : f32
    %208 = vector.broadcast %cst_105 : f32 to vector<1x16xf32>
    %209 = arith.mulf %205, %208 : vector<1x16xf32>
    %210 = arith.mulf %207, %207 : vector<1x16xf32>
    %211 = arith.subf %209, %210 : vector<1x16xf32>
    %cst_106 = arith.constant 0.000000e+00 : f32
    %212 = vector.broadcast %cst_106 : f32 to vector<1x16xf32>
    %213 = arith.maximumf %211, %212 : vector<1x16xf32>
    %cst_107 = arith.constant 9.99999974E-6 : f32
    %214 = vector.broadcast %cst_107 : f32 to vector<1x16xf32>
    %215 = arith.addf %213, %214 : vector<1x16xf32>
    %216 = math.rsqrt %215 : vector<1x16xf32>
    %217 = arith.mulf %199, %216 : vector<1x16xf32>
    %218 = arith.mulf %207, %217 : vector<1x16xf32>
    %219 = arith.subf %200, %218 : vector<1x16xf32>
    %220 = vector.broadcast %217 : vector<1x16xf32> to vector<8x16xf32>
    %221 = arith.mulf %198, %220 : vector<8x16xf32>
    %222 = vector.broadcast %219 : vector<1x16xf32> to vector<8x16xf32>
    %223 = arith.addf %221, %222 : vector<8x16xf32>
    %cst_108 = arith.constant 0.000000e+00 : f32
    %224 = vector.broadcast %cst_108 : f32 to vector<8x16xf32>
    %225 = arith.maximumf %223, %224 : vector<8x16xf32>
    %c0_109 = arith.constant 0 : index
    %c0_110 = arith.constant 0 : index
    %226 = vector.load %arg10[%c0_109, %c0_110] : memref<16x128xbf16, #tpu.memory_space<vmem>>, vector<16x128xbf16>
    %227 = arith.truncf %225 : vector<8x16xf32> to vector<8x16xbf16>
    %cst_111 = arith.constant dense<0.000000e+00> : vector<8x128xf32>
    %228 = tpu.matmul %227, %226, %cst_111 {dimension_numbers = #tpu.dot_dimension_numbers<[1], [0], [0], [1], [0, 0, 1, 1], [], []>} : vector<8x16xbf16>, vector<16x128xbf16>, vector<8x128xf32> -> vector<8x128xf32>
    %c0_112 = arith.constant 0 : index
    %c0_113 = arith.constant 0 : index
    %229 = vector.load %arg11[%c0_112, %c0_113] : memref<1x128xf32, #tpu.memory_space<vmem>>, vector<1x128xf32>
    %230 = vector.broadcast %229 : vector<1x128xf32> to vector<8x128xf32>
    %231 = arith.addf %228, %230 : vector<8x128xf32>
    %c0_114 = arith.constant 0 : index
    %c0_115 = arith.constant 0 : index
    %232 = vector.load %arg12[%c0_114, %c0_115] : memref<8x128xf32, #tpu.memory_space<vmem>>, vector<8x128xf32>
    tpu.vector_store %arg12[%c0_114, %c0_115], %231 {strides = array<i32>} : memref<8x128xf32, #tpu.memory_space<vmem>>, vector<8x128xf32>,
    return
  }
}

</mosaic_0001>

<llo_original>
// kernel: dnn_forward.1
$region0: #{dnn_forward.1}
  #allocation0 [shape = 'u32[]', space=smem, size = 0x4, offset = 0x4, fixed_abs, tag = 'smem constant byte address 0x4 - core index']
  #allocation1 [shape = 'u32[144,128]{1,0:T(1,128)}', space=vmem, size = 0x12000, scoped, tag = 'internal scratch']
  %s0 = inlined_call_operand.vmem [shape: f32[8,16], index: 0, kind: input, shape index: {}]
  %s1 = inlined_call_operand.vmem [shape: bf16[16,32], index: 1, kind: input, shape index: {}]
  %s2 = inlined_call_operand.vmem [shape: f32[1,32], index: 2, kind: input, shape index: {}]
  %s3 = inlined_call_operand.vmem [shape: f32[1,32], index: 3, kind: input, shape index: {}]
  %s4 = inlined_call_operand.hbm [shape: bf16[5,32,32], index: 4, kind: input, shape index: {}]
  %s5 = inlined_call_operand.vmem [shape: f32[5,1,32], index: 5, kind: input, shape index: {}]
  %s6 = inlined_call_operand.hbm [shape: f32[5,1,32], index: 6, kind: input, shape index: {}]
  %s7 = inlined_call_operand.vmem [shape: bf16[32,16], index: 7, kind: input, shape index: {}]
  %s8 = inlined_call_operand.vmem [shape: f32[1,16], index: 8, kind: input, shape index: {}]
  %s9 = inlined_call_operand.hbm [shape: f32[1,16], index: 9, kind: input, shape index: {}]
  %s10 = inlined_call_operand.vmem [shape: bf16[16,128], index: 10, kind: input, shape index: {}]
  %s11 = inlined_call_operand.hbm [shape: f32[1,128], index: 11, kind: input, shape index: {}]
  %s12 = inlined_call_operand.vmem [shape: f32[8,128], index: 12, kind: output, shape index: {}]
  %s13 = sld [smem:[#allocation0]]
  $region74: #{dnn_forward.1} parent=0
    _
  %s15 = ssub.s32 1, %s13
  %s16 = scalar_select 0, %s15, %s13
  $region1: #{dnn_forward.1} parent=0
    #allocation2 [shape = 'u8[40960]{0}', space=vmem, size = 0xa000, scoped, tag = 'input window, operand 4, single buffered']
    #allocation3 [shape = 's32[1]{0}', space=sflag, size = 0x4, scoped, tag = 'scoped memory for dnn_forward.1']
    #allocation4 [shape = 'u8[2560]{0}', space=vmem, size = 0xc00, scoped, tag = 'input window, operand 6, single buffered']
    #allocation5 [shape = 's32[1]{0}', space=sflag, size = 0x4, scoped, tag = 'scoped memory for dnn_forward.1']
    #allocation6 [shape = 'u8[512]{0}', space=vmem, size = 0x400, scoped, tag = 'input window, operand 9, single buffered']
    #allocation7 [shape = 'u8[512]{0}', space=vmem, size = 0x400, scoped, tag = 'input window, operand 11, single buffered']
    #allocation8 [shape = 's32[1]{0}', space=sflag, size = 0x4, scoped, tag = 'scoped memory for dnn_forward.1']
    %17 = vsyncpa [#allocation3], 0
    %18 = vsyncpa [#allocation5], 0
    %19 = vsyncpa [#allocation8], 0
    // Predicated region
    $region2: #{dnn_forward.1} parent=1 // pred_check
      _
    $region3: #{dnn_forward.1} parent=1 // pred_check_branch
      %21 = sbr.rel (0) target = $region5
    $region4: #{dnn_forward.1} parent=1 // pred_region
      _
    $region5: #{dnn_forward.1} parent=1 // pred_fallthru
      _
    // Predicated region
    $region6: #{dnn_forward.1} parent=1 // pred_check
      _
    $region7: #{dnn_forward.1} parent=1 // pred_check_branch
      %23 = sbr.rel (0) target = $region9
    $region8: #{dnn_forward.1} parent=1 // pred_region
      _
    $region9: #{dnn_forward.1} parent=1 // pred_fallthru
      _
    // Predicated region
    $region10: #{dnn_forward.1} parent=1 // pred_check
      _
    $region11: #{dnn_forward.1} parent=1 // pred_check_branch
      %25 = sbr.rel (0) target = $region13
    $region12: #{dnn_forward.1} parent=1 // pred_region
      _
    $region13: #{dnn_forward.1} parent=1 // pred_fallthru
      _
    // Predicated region
    $region14: #{dnn_forward.1} parent=1 // pred_check
      _
    $region15: #{dnn_forward.1} parent=1 // pred_check_branch
      %27 = sbr.rel (0) target = $region17
    $region16: #{dnn_forward.1} parent=1 // pred_region
      _
    $region17: #{dnn_forward.1} parent=1 // pred_fallthru
      _
    // Predicated region
    $region18: #{dnn_forward.1} parent=1 // pred_check
      _
    $region19: #{dnn_forward.1} parent=1 // pred_check_branch
      %29 = sbr.rel (0) target = $region21
    $region20: #{dnn_forward.1} parent=1 // pred_region
      %s31 = ssub.s32 1280, 1280
      %32 = vsyncadd [#allocation3], %s31
      %s33 = sshll.u32 [#allocation2], 4
      %s34 = int_to_ptr.vmem [resolvable:$true] %s33
      %39 = dma.hbm_to_vmem [thread:$0]  %s4, 1280, %s34, [#allocation3], 64, 64, 4
    $region21: #{dnn_forward.1} parent=1 // pred_fallthru
      _
    // Predicated region
    $region22: #{dnn_forward.1} parent=1 // pred_check
      _
    $region23: #{dnn_forward.1} parent=1 // pred_check_branch
      %41 = sbr.rel (0) target = $region25
    $region24: #{dnn_forward.1} parent=1 // pred_region
      _
    $region25: #{dnn_forward.1} parent=1 // pred_fallthru
      _
    // Predicated region
    $region26: #{dnn_forward.1} parent=1 // pred_check
      _
    $region27: #{dnn_forward.1} parent=1 // pred_check_branch
      %43 = sbr.rel (0) target = $region29
    $region28: #{dnn_forward.1} parent=1 // pred_region
      %s45 = ssub.s32 80, 80
      %46 = vsyncadd [#allocation5], %s45
      %s47 = sshll.u32 [#allocation4], 4
      %s48 = int_to_ptr.vmem [resolvable:$true] %s47
      %53 = dma.hbm_to_vmem [thread:$0]  %s6, 80, %s48, [#allocation5], 16, 16, 1
    $region29: #{dnn_forward.1} parent=1 // pred_fallthru
      _
    // Predicated region
    $region30: #{dnn_forward.1} parent=1 // pred_check
      _
    $region31: #{dnn_forward.1} parent=1 // pred_check_branch
      %55 = sbr.rel (0) target = $region33
    $region32: #{dnn_forward.1} parent=1 // pred_region
      _
    $region33: #{dnn_forward.1} parent=1 // pred_fallthru
      _
    // Predicated region
    $region34: #{dnn_forward.1} parent=1 // pred_check
      _
    $region35: #{dnn_forward.1} parent=1 // pred_check_branch
      %57 = sbr.rel (0) target = $region37
    $region36: #{dnn_forward.1} parent=1 // pred_region
      _
    $region37: #{dnn_forward.1} parent=1 // pred_fallthru
      _
    // Predicated region
    $region38: #{dnn_forward.1} parent=1 // pred_check
      _
    $region39: #{dnn_forward.1} parent=1 // pred_check_branch
      %59 = sbr.rel (0) target = $region41
    $region40: #{dnn_forward.1} parent=1 // pred_region
      %s61 = ssub.s32 16, 16
      %62 = vsyncadd [#allocation5], %s61
      %s64 = sshll.u32 [#allocation6], 4
      %s65 = int_to_ptr.vmem [resolvable:$true] %s64
      %67 = dma.hbm_to_vmem [thread:$0]  %s9, 16, %s65, [#allocation5]
    $region41: #{dnn_forward.1} parent=1 // pred_fallthru
      _
    // Predicated region
    $region42: #{dnn_forward.1} parent=1 // pred_check
      _
    $region43: #{dnn_forward.1} parent=1 // pred_check_branch
      %69 = sbr.rel (0) target = $region45
    $region44: #{dnn_forward.1} parent=1 // pred_region
      _
    $region45: #{dnn_forward.1} parent=1 // pred_fallthru
      _
    // Predicated region
    $region46: #{dnn_forward.1} parent=1 // pred_check
      _
    $region47: #{dnn_forward.1} parent=1 // pred_check_branch
      %71 = sbr.rel (0) target = $region49
    $region48: #{dnn_forward.1} parent=1 // pred_region
      %s73 = ssub.s32 16, 16
      %74 = vsyncadd [#allocation8], %s73
      %s76 = sshll.u32 [#allocation7], 4
      %s77 = int_to_ptr.vmem [resolvable:$true] %s76
      %79 = dma.hbm_to_vmem [thread:$0]  %s11, 16, %s77, [#allocation8]
    $region49: #{dnn_forward.1} parent=1 // pred_fallthru
      _
    // Predicated region
    $region50: #{dnn_forward.1} parent=1 // pred_check
      _
    $region51: #{dnn_forward.1} parent=1 // pred_check_branch
      %81 = sbr.rel (0) target = $region53
    $region52: #{dnn_forward.1} parent=1 // pred_region
      %82 = dma.done [#allocation3], 1280
    $region53: #{dnn_forward.1} parent=1 // pred_fallthru
      _
    // Predicated region
    $region54: #{dnn_forward.1} parent=1 // pred_check
      _
    $region55: #{dnn_forward.1} parent=1 // pred_check_branch
      %84 = sbr.rel (0) target = $region57
    $region56: #{dnn_forward.1} parent=1 // pred_region
      %85 = dma.done [#allocation5], 80
    $region57: #{dnn_forward.1} parent=1 // pred_fallthru
      _
    // Predicated region
    $region58: #{dnn_forward.1} parent=1 // pred_check
      _
    $region59: #{dnn_forward.1} parent=1 // pred_check_branch
      %87 = sbr.rel (0) target = $region61
    $region60: #{dnn_forward.1} parent=1 // pred_region
      %88 = dma.done [#allocation5], 16
    $region61: #{dnn_forward.1} parent=1 // pred_fallthru
      _
    // Predicated region
    $region62: #{dnn_forward.1} parent=1 // pred_check
      _
    $region63: #{dnn_forward.1} parent=1 // pred_check_branch
      %90 = sbr.rel (0) target = $region65
    $region64: #{dnn_forward.1} parent=1 // pred_region
      %91 = dma.done [#allocation8], 16
    $region65: #{dnn_forward.1} parent=1 // pred_fallthru
      _
    %v93 = vld [vmem:[%s0] sm:$0xff]
    %v94 = vld [vmem:[%s1] sm:$0xf]
    %v95 = vld [vmem:[%s1 + $0x4] sm:$0xf]
    %v96 = vpack.c.bf16 %v93, %v93
    %v99 = vunpack.c.l.b16 %v94
    %v100 = vunpack.c.l.b16 %v95
    %v101 = vpack.c.b16 %v100, %v99
    %vm103 = vcmask 130048
    %v105 = vsel %vm103, %v96, 0
    %107 = vmatprep.subr.bf16.mxu0 0
    %108 = vmatpush1.bf16.msra.mxu0 %v101
    %109 = vmatprep.subr.bf16.mxu0 0
    %110 = vmatpush1.bf16.msra.mxu0 0
    %111 = vmatprep.subr.bf16.mxu0 0
    %112 = vmatpush1.bf16.msra.mxu0 0
    %113 = vmatprep.subr.bf16.mxu0 0
    %114 = vmatpush1.bf16.msra.mxu0 0
    %115 = vmatprep.subr.bf16.mxu0 0
    %116 = vmatpush1.bf16.msra.mxu0 0
    %117 = vmatprep.subr.bf16.mxu0 0
    %118 = vmatpush1.bf16.msra.mxu0 0
    %119 = vmatprep.subr.bf16.mxu0 0
    %120 = vmatpush1.bf16.msra.mxu0 0
    %121 = vmatprep.subr.bf16.mxu0 0
    %122 = vmatpush1.bf16.msra.mxu0 0
    %123 = vmatprep.subr.bf16.mxu0 0
    %124 = vmatpush1.bf16.msra.mxu0 0
    %125 = vmatprep.subr.bf16.mxu0 0
    %126 = vmatpush1.bf16.msra.mxu0 0
    %127 = vmatprep.subr.bf16.mxu0 0
    %128 = vmatpush1.bf16.msra.mxu0 0
    %129 = vmatprep.subr.bf16.mxu0 0
    %130 = vmatpush1.bf16.msra.mxu0 0
    %131 = vmatprep.subr.bf16.mxu0 0
    %132 = vmatpush1.bf16.msra.mxu0 0
    %133 = vmatprep.subr.bf16.mxu0 0
    %134 = vmatpush1.bf16.msra.mxu0 0
    %135 = vmatprep.subr.bf16.mxu0 0
    %136 = vmatpush1.bf16.msra.mxu0 0
    %137 = vmatprep.subr.bf16.mxu0 0
    %138 = vmatpush1.bf16.msra.mxu0 0
    %139 = vmatprep.mubr.bf16.mxu0 0
    %140 = vmatmul.mubr.bf16.gmra.mrb[0].mxu0 %v105
    %v141 = vpop.f32.mrb[0].mxu0
    %v142 = vadd.f32 0.0, %v141
    %v143 = vpop.f32.mrb[0].mxu0
    %v144 = vpop.f32.mrb[0].mxu0
    %v145 = vpop.f32.mrb[0].mxu0
    %146 = vdwg.mxu0
    %v147 = vld [vmem:[%s2] sm:$0x1]
    %v148 = vld [vmem:[%s3] sm:$0x1]
    %vm149 = vcmask 261120
    %v150 = vsel %vm149, %v142, 0.0
    %v151 = vrot.slane %v150, 4
    %v152 = vadd.f32 %v150, %v151
    %v153 = vrot.slane %v152, 2
    %v154 = vadd.f32 %v152, %v153
    %v155 = vrot.slane %v154, 1
    %v156 = vadd.f32 %v154, %v155
    %v157 = vmul.f32 %v142, %v142
    %v158 = vsel %vm149, %v157, 0.0
    %v159 = vrot.slane %v158, 4
    %v160 = vadd.f32 %v158, %v159
    %v161 = vrot.slane %v160, 2
    %v162 = vadd.f32 %v160, %v161
    %v163 = vrot.slane %v162, 1
    %v164 = vadd.f32 %v162, %v163
    %v165 = vmul.f32 %v156, 0.125
    %v166 = vmul.f32 %v164, 0.125
    %v167 = vmul.f32 %v165, %v165
    %v168 = vsub.f32 %v166, %v167
    %v169 = vmax.f32 %v168, 0.0
    %v170 = vadd.f32 %v169, 1e-05
    %v171 = vrsqrt.pop %v170
    %v172 = vmul.f32 %v147, %v171
    %v173 = vmul.f32 %v165, %v172
    %v174 = vsub.f32 %v148, %v173
    %v176 = vlaneseq
    %v177 = vshrl.u32 %v176, 7
    %v178 = vsub.s32 0, %v177
    %v179 = vrot.slane %v172, %v178
    %v181 = vmul.f32 %v142, %v179
    %v183 = vlaneseq
    %v184 = vshrl.u32 %v183, 7
    %v185 = vsub.s32 0, %v184
    %v186 = vrot.slane %v174, %v185
    %v188 = vadd.f32 %v181, %v186
    %v189 = vmax.f32 %v188, 0.0
    %v190 = vld [vmem:[#allocation2] sm:$0xf]
    %v191 = vld [vmem:[#allocation2 + $0x4] sm:$0xf]
    %v192 = vld [vmem:[#allocation2 + $0x8] sm:$0xf]
    %v193 = vld [vmem:[#allocation2 + $0xc] sm:$0xf]
    %v194 = vpack.c.bf16 %v189, %v189
    %v199 = vunpack.c.l.b16 %v190
    %v200 = vunpack.c.l.b16 %v191
    %v201 = vunpack.c.l.b16 %v192
    %v202 = vunpack.c.l.b16 %v193
    %v203 = vpack.c.b16 %v200, %v199
    %v204 = vpack.c.b16 %v202, %v201
    %v208 = vsel %vm149, %v194, 0
    %210 = vmatprep.subr.bf16.mxu0 0
    %211 = vmatpush1.bf16.msra.mxu0 %v203
    %212 = vmatprep.subr.bf16.mxu0 0
    %213 = vmatpush1.bf16.msra.mxu0 %v204
    %214 = vmatprep.subr.bf16.mxu0 0
    %215 = vmatpush1.bf16.msra.mxu0 0
    %216 = vmatprep.subr.bf16.mxu0 0
    %217 = vmatpush1.bf16.msra.mxu0 0
    %218 = vmatprep.subr.bf16.mxu0 0
    %219 = vmatpush1.bf16.msra.mxu0 0
    %220 = vmatprep.subr.bf16.mxu0 0
    %221 = vmatpush1.bf16.msra.mxu0 0
    %222 = vmatprep.subr.bf16.mxu0 0
    %223 = vmatpush1.bf16.msra.mxu0 0
    %224 = vmatprep.subr.bf16.mxu0 0
    %225 = vmatpush1.bf16.msra.mxu0 0
    %226 = vmatprep.subr.bf16.mxu0 0
    %227 = vmatpush1.bf16.msra.mxu0 0
    %228 = vmatprep.subr.bf16.mxu0 0
    %229 = vmatpush1.bf16.msra.mxu0 0
    %230 = vmatprep.subr.bf16.mxu0 0
    %231 = vmatpush1.bf16.msra.mxu0 0
    %232 = vmatprep.subr.bf16.mxu0 0
    %233 = vmatpush1.bf16.msra.mxu0 0
    %234 = vmatprep.subr.bf16.mxu0 0
    %235 = vmatpush1.bf16.msra.mxu0 0
    %236 = vmatprep.subr.bf16.mxu0 0
    %237 = vmatpush1.bf16.msra.mxu0 0
    %238 = vmatprep.subr.bf16.mxu0 0
    %239 = vmatpush1.bf16.msra.mxu0 0
    %240 = vmatprep.subr.bf16.mxu0 0
    %241 = vmatpush1.bf16.msra.mxu0 0
    %242 = vmatprep.mubr.bf16.mxu0 0
    %243 = vmatmul.mubr.bf16.gmra.mrb[0].mxu0 %v208
    %v244 = vpop.f32.mrb[0].mxu0
    %v245 = vadd.f32 0.0, %v244
    %v246 = vpop.f32.mrb[0].mxu0
    %v247 = vpop.f32.mrb[0].mxu0
    %v248 = vpop.f32.mrb[0].mxu0
    %249 = vdwg.mxu0
    %v250 = vld [vmem:[%s5] sm:$0x1]
    %v251 = vld [vmem:[#allocation4] sm:$0x1]
    %v252 = vsel %vm149, %v245, 0.0
    %v253 = vrot.slane %v252, 4
    %v254 = vadd.f32 %v252, %v253
    %v255 = vrot.slane %v254, 2
    %v256 = vadd.f32 %v254, %v255
    %v257 = vrot.slane %v256, 1
    %v258 = vadd.f32 %v256, %v257
    %v259 = vmul.f32 %v245, %v245
    %v260 = vsel %vm149, %v259, 0.0
    %v261 = vrot.slane %v260, 4
    %v262 = vadd.f32 %v260, %v261
    %v263 = vrot.slane %v262, 2
    %v264 = vadd.f32 %v262, %v263
    %v265 = vrot.slane %v264, 1
    %v266 = vadd.f32 %v264, %v265
    %v267 = vmul.f32 %v258, 0.125
    %v268 = vmul.f32 %v266, 0.125
    %v269 = vmul.f32 %v267, %v267
    %v270 = vsub.f32 %v268, %v269
    %v271 = vmax.f32 %v270, 0.0
    %v272 = vadd.f32 %v271, 1e-05
    %v273 = vrsqrt.pop %v272
    %v274 = vmul.f32 %v250, %v273
    %v275 = vmul.f32 %v267, %v274
    %v276 = vsub.f32 %v251, %v275
    %v278 = vlaneseq
    %v279 = vshrl.u32 %v278, 7
    %v280 = vsub.s32 0, %v279
    %v281 = vrot.slane %v274, %v280
    %v283 = vmul.f32 %v245, %v281
    %v285 = vlaneseq
    %v286 = vshrl.u32 %v285, 7
    %v287 = vsub.s32 0, %v286
    %v288 = vrot.slane %v276, %v287
    %v290 = vadd.f32 %v283, %v288
    %v291 = vmax.f32 %v290, 0.0
    %s292 = scalar_lea.vmem [#allocation2], 16
    %v293 = vld [vmem:[%s292] sm:$0xf]
    %v294 = vld [vmem:[%s292 + $0x4] sm:$0xf]
    %v295 = vld [vmem:[%s292 + $0x8] sm:$0xf]
    %v296 = vld [vmem:[%s292 + $0xc] sm:$0xf]
    %v297 = vpack.c.bf16 %v291, %v291
    %v302 = vunpack.c.l.b16 %v293
    %v303 = vunpack.c.l.b16 %v294
    %v304 = vunpack.c.l.b16 %v295
    %v305 = vunpack.c.l.b16 %v296
    %v306 = vpack.c.b16 %v303, %v302
    %v307 = vpack.c.b16 %v305, %v304
    %v311 = vsel %vm149, %v297, 0
    %313 = vmatprep.subr.bf16.mxu0 0
    %314 = vmatpush1.bf16.msra.mxu0 %v306
    %315 = vmatprep.subr.bf16.mxu0 0
    %316 = vmatpush1.bf16.msra.mxu0 %v307
    %317 = vmatprep.subr.bf16.mxu0 0
    %318 = vmatpush1.bf16.msra.mxu0 0
    %319 = vmatprep.subr.bf16.mxu0 0
    %320 = vmatpush1.bf16.msra.mxu0 0
    %321 = vmatprep.subr.bf16.mxu0 0
    %322 = vmatpush1.bf16.msra.mxu0 0
    %323 = vmatprep.subr.bf16.mxu0 0
    %324 = vmatpush1.bf16.msra.mxu0 0
    %325 = vmatprep.subr.bf16.mxu0 0
    %326 = vmatpush1.bf16.msra.mxu0 0
    %327 = vmatprep.subr.bf16.mxu0 0
    %328 = vmatpush1.bf16.msra.mxu0 0
    %329 = vmatprep.subr.bf16.mxu0 0
    %330 = vmatpush1.bf16.msra.mxu0 0
    %331 = vmatprep.subr.bf16.mxu0 0
    %332 = vmatpush1.bf16.msra.mxu0 0
    %333 = vmatprep.subr.bf16.mxu0 0
    %334 = vmatpush1.bf16.msra.mxu0 0
    %335 = vmatprep.subr.bf16.mxu0 0
    %336 = vmatpush1.bf16.msra.mxu0 0
    %337 = vmatprep.subr.bf16.mxu0 0
    %338 = vmatpush1.bf16.msra.mxu0 0
    %339 = vmatprep.subr.bf16.mxu0 0
    %340 = vmatpush1.bf16.msra.mxu0 0
    %341 = vmatprep.subr.bf16.mxu0 0
    %342 = vmatpush1.bf16.msra.mxu0 0
    %343 = vmatprep.subr.bf16.mxu0 0
    %344 = vmatpush1.bf16.msra.mxu0 0
    %345 = vmatprep.mubr.bf16.mxu0 0
    %346 = vmatmul.mubr.bf16.gmra.mrb[0].mxu0 %v311
    %v347 = vpop.f32.mrb[0].mxu0
    %v348 = vadd.f32 0.0, %v347
    %v349 = vpop.f32.mrb[0].mxu0
    %v350 = vpop.f32.mrb[0].mxu0
    %v351 = vpop.f32.mrb[0].mxu0
    %352 = vdwg.mxu0
    %s353 = scalar_lea.vmem %s5, 1
    %v354 = vld [vmem:[%s353] sm:$0x1]
    %s355 = scalar_lea.vmem [#allocation4], 1
    %v356 = vld [vmem:[%s355] sm:$0x1]
    %v357 = vsel %vm149, %v348, 0.0
    %v358 = vrot.slane %v357, 4
    %v359 = vadd.f32 %v357, %v358
    %v360 = vrot.slane %v359, 2
    %v361 = vadd.f32 %v359, %v360
    %v362 = vrot.slane %v361, 1
    %v363 = vadd.f32 %v361, %v362
    %v364 = vmul.f32 %v348, %v348
    %v365 = vsel %vm149, %v364, 0.0
    %v366 = vrot.slane %v365, 4
    %v367 = vadd.f32 %v365, %v366
    %v368 = vrot.slane %v367, 2
    %v369 = vadd.f32 %v367, %v368
    %v370 = vrot.slane %v369, 1
    %v371 = vadd.f32 %v369, %v370
    %v372 = vmul.f32 %v363, 0.125
    %v373 = vmul.f32 %v371, 0.125
    %v374 = vmul.f32 %v372, %v372
    %v375 = vsub.f32 %v373, %v374
    %v376 = vmax.f32 %v375, 0.0
    %v377 = vadd.f32 %v376, 1e-05
    %v378 = vrsqrt.pop %v377
    %v379 = vmul.f32 %v354, %v378
    %v380 = vmul.f32 %v372, %v379
    %v381 = vsub.f32 %v356, %v380
    %v383 = vlaneseq
    %v384 = vshrl.u32 %v383, 7
    %v385 = vsub.s32 0, %v384
    %v386 = vrot.slane %v379, %v385
    %v388 = vmul.f32 %v348, %v386
    %v390 = vlaneseq
    %v391 = vshrl.u32 %v390, 7
    %v392 = vsub.s32 0, %v391
    %v393 = vrot.slane %v381, %v392
    %v395 = vadd.f32 %v388, %v393
    %v396 = vmax.f32 %v395, 0.0
    %s397 = scalar_lea.vmem [#allocation2], 32
    %v398 = vld [vmem:[%s397] sm:$0xf]
    %v399 = vld [vmem:[%s397 + $0x4] sm:$0xf]
    %v400 = vld [vmem:[%s397 + $0x8] sm:$0xf]
    %v401 = vld [vmem:[%s397 + $0xc] sm:$0xf]
    %v402 = vpack.c.bf16 %v396, %v396
    %v407 = vunpack.c.l.b16 %v398
    %v408 = vunpack.c.l.b16 %v399
    %v409 = vunpack.c.l.b16 %v400
    %v410 = vunpack.c.l.b16 %v401
    %v411 = vpack.c.b16 %v408, %v407
    %v412 = vpack.c.b16 %v410, %v409
    %v416 = vsel %vm149, %v402, 0
    %418 = vmatprep.subr.bf16.mxu0 0
    %419 = vmatpush1.bf16.msra.mxu0 %v411
    %420 = vmatprep.subr.bf16.mxu0 0
    %421 = vmatpush1.bf16.msra.mxu0 %v412
    %422 = vmatprep.subr.bf16.mxu0 0
    %423 = vmatpush1.bf16.msra.mxu0 0
    %424 = vmatprep.subr.bf16.mxu0 0
    %425 = vmatpush1.bf16.msra.mxu0 0
    %426 = vmatprep.subr.bf16.mxu0 0
    %427 = vmatpush1.bf16.msra.mxu0 0
    %428 = vmatprep.subr.bf16.mxu0 0
    %429 = vmatpush1.bf16.msra.mxu0 0
    %430 = vmatprep.subr.bf16.mxu0 0
    %431 = vmatpush1.bf16.msra.mxu0 0
    %432 = vmatprep.subr.bf16.mxu0 0
    %433 = vmatpush1.bf16.msra.mxu0 0
    %434 = vmatprep.subr.bf16.mxu0 0
    %435 = vmatpush1.bf16.msra.mxu0 0
    %436 = vmatprep.subr.bf16.mxu0 0
    %437 = vmatpush1.bf16.msra.mxu0 0
    %438 = vmatprep.subr.bf16.mxu0 0
    %439 = vmatpush1.bf16.msra.mxu0 0
    %440 = vmatprep.subr.bf16.mxu0 0
    %441 = vmatpush1.bf16.msra.mxu0 0
    %442 = vmatprep.subr.bf16.mxu0 0
    %443 = vmatpush1.bf16.msra.mxu0 0
    %444 = vmatprep.subr.bf16.mxu0 0
    %445 = vmatpush1.bf16.msra.mxu0 0
    %446 = vmatprep.subr.bf16.mxu0 0
    %447 = vmatpush1.bf16.msra.mxu0 0
    %448 = vmatprep.subr.bf16.mxu0 0
    %449 = vmatpush1.bf16.msra.mxu0 0
    %450 = vmatprep.mubr.bf16.mxu0 0
    %451 = vmatmul.mubr.bf16.gmra.mrb[0].mxu0 %v416
    %v452 = vpop.f32.mrb[0].mxu0
    %v453 = vadd.f32 0.0, %v452
    %v454 = vpop.f32.mrb[0].mxu0
    %v455 = vpop.f32.mrb[0].mxu0
    %v456 = vpop.f32.mrb[0].mxu0
    %457 = vdwg.mxu0
    %s458 = scalar_lea.vmem %s5, 2
    %v459 = vld [vmem:[%s458] sm:$0x1]
    %s460 = scalar_lea.vmem [#allocation4], 2
    %v461 = vld [vmem:[%s460] sm:$0x1]
    %v462 = vsel %vm149, %v453, 0.0
    %v463 = vrot.slane %v462, 4
    %v464 = vadd.f32 %v462, %v463
    %v465 = vrot.slane %v464, 2
    %v466 = vadd.f32 %v464, %v465
    %v467 = vrot.slane %v466, 1
    %v468 = vadd.f32 %v466, %v467
    %v469 = vmul.f32 %v453, %v453
    %v470 = vsel %vm149, %v469, 0.0
    %v471 = vrot.slane %v470, 4
    %v472 = vadd.f32 %v470, %v471
    %v473 = vrot.slane %v472, 2
    %v474 = vadd.f32 %v472, %v473
    %v475 = vrot.slane %v474, 1
    %v476 = vadd.f32 %v474, %v475
    %v477 = vmul.f32 %v468, 0.125
    %v478 = vmul.f32 %v476, 0.125
    %v479 = vmul.f32 %v477, %v477
    %v480 = vsub.f32 %v478, %v479
    %v481 = vmax.f32 %v480, 0.0
    %v482 = vadd.f32 %v481, 1e-05
    %v483 = vrsqrt.pop %v482
    %v484 = vmul.f32 %v459, %v483
    %v485 = vmul.f32 %v477, %v484
    %v486 = vsub.f32 %v461, %v485
    %v488 = vlaneseq
    %v489 = vshrl.u32 %v488, 7
    %v490 = vsub.s32 0, %v489
    %v491 = vrot.slane %v484, %v490
    %v493 = vmul.f32 %v453, %v491
    %v495 = vlaneseq
    %v496 = vshrl.u32 %v495, 7
    %v497 = vsub.s32 0, %v496
    %v498 = vrot.slane %v486, %v497
    %v500 = vadd.f32 %v493, %v498
    %v501 = vmax.f32 %v500, 0.0
    %s502 = scalar_lea.vmem [#allocation2], 48
    %v503 = vld [vmem:[%s502] sm:$0xf]
    %v504 = vld [vmem:[%s502 + $0x4] sm:$0xf]
    %v505 = vld [vmem:[%s502 + $0x8] sm:$0xf]
    %v506 = vld [vmem:[%s502 + $0xc] sm:$0xf]
    %v507 = vpack.c.bf16 %v501, %v501
    %v512 = vunpack.c.l.b16 %v503
    %v513 = vunpack.c.l.b16 %v504
    %v514 = vunpack.c.l.b16 %v505
    %v515 = vunpack.c.l.b16 %v506
    %v516 = vpack.c.b16 %v513, %v512
    %v517 = vpack.c.b16 %v515, %v514
    %v521 = vsel %vm149, %v507, 0
    %523 = vmatprep.subr.bf16.mxu0 0
    %524 = vmatpush1.bf16.msra.mxu0 %v516
    %525 = vmatprep.subr.bf16.mxu0 0
    %526 = vmatpush1.bf16.msra.mxu0 %v517
    %527 = vmatprep.subr.bf16.mxu0 0
    %528 = vmatpush1.bf16.msra.mxu0 0
    %529 = vmatprep.subr.bf16.mxu0 0
    %530 = vmatpush1.bf16.msra.mxu0 0
    %531 = vmatprep.subr.bf16.mxu0 0
    %532 = vmatpush1.bf16.msra.mxu0 0
    %533 = vmatprep.subr.bf16.mxu0 0
    %534 = vmatpush1.bf16.msra.mxu0 0
    %535 = vmatprep.subr.bf16.mxu0 0
    %536 = vmatpush1.bf16.msra.mxu0 0
    %537 = vmatprep.subr.bf16.mxu0 0
    %538 = vmatpush1.bf16.msra.mxu0 0
    %539 = vmatprep.subr.bf16.mxu0 0
    %540 = vmatpush1.bf16.msra.mxu0 0
    %541 = vmatprep.subr.bf16.mxu0 0
    %542 = vmatpush1.bf16.msra.mxu0 0
    %543 = vmatprep.subr.bf16.mxu0 0
    %544 = vmatpush1.bf16.msra.mxu0 0
    %545 = vmatprep.subr.bf16.mxu0 0
    %546 = vmatpush1.bf16.msra.mxu0 0
    %547 = vmatprep.subr.bf16.mxu0 0
    %548 = vmatpush1.bf16.msra.mxu0 0
    %549 = vmatprep.subr.bf16.mxu0 0
    %550 = vmatpush1.bf16.msra.mxu0 0
    %551 = vmatprep.subr.bf16.mxu0 0
    %552 = vmatpush1.bf16.msra.mxu0 0
    %553 = vmatprep.subr.bf16.mxu0 0
    %554 = vmatpush1.bf16.msra.mxu0 0
    %555 = vmatprep.mubr.bf16.mxu0 0
    %556 = vmatmul.mubr.bf16.gmra.mrb[0].mxu0 %v521
    %v557 = vpop.f32.mrb[0].mxu0
    %v558 = vadd.f32 0.0, %v557
    %v559 = vpop.f32.mrb[0].mxu0
    %v560 = vpop.f32.mrb[0].mxu0
    %v561 = vpop.f32.mrb[0].mxu0
    %562 = vdwg.mxu0
    %s563 = scalar_lea.vmem %s5, 3
    %v564 = vld [vmem:[%s563] sm:$0x1]
    %s565 = scalar_lea.vmem [#allocation4], 3
    %v566 = vld [vmem:[%s565] sm:$0x1]
    %v567 = vsel %vm149, %v558, 0.0
    %v568 = vrot.slane %v567, 4
    %v569 = vadd.f32 %v567, %v568
    %v570 = vrot.slane %v569, 2
    %v571 = vadd.f32 %v569, %v570
    %v572 = vrot.slane %v571, 1
    %v573 = vadd.f32 %v571, %v572
    %v574 = vmul.f32 %v558, %v558
    %v575 = vsel %vm149, %v574, 0.0
    %v576 = vrot.slane %v575, 4
    %v577 = vadd.f32 %v575, %v576
    %v578 = vrot.slane %v577, 2
    %v579 = vadd.f32 %v577, %v578
    %v580 = vrot.slane %v579, 1
    %v581 = vadd.f32 %v579, %v580
    %v582 = vmul.f32 %v573, 0.125
    %v583 = vmul.f32 %v581, 0.125
    %v584 = vmul.f32 %v582, %v582
    %v585 = vsub.f32 %v583, %v584
    %v586 = vmax.f32 %v585, 0.0
    %v587 = vadd.f32 %v586, 1e-05
    %v588 = vrsqrt.pop %v587
    %v589 = vmul.f32 %v564, %v588
    %v590 = vmul.f32 %v582, %v589
    %v591 = vsub.f32 %v566, %v590
    %v593 = vlaneseq
    %v594 = vshrl.u32 %v593, 7
    %v595 = vsub.s32 0, %v594
    %v596 = vrot.slane %v589, %v595
    %v598 = vmul.f32 %v558, %v596
    %v600 = vlaneseq
    %v601 = vshrl.u32 %v600, 7
    %v602 = vsub.s32 0, %v601
    %v603 = vrot.slane %v591, %v602
    %v605 = vadd.f32 %v598, %v603
    %v606 = vmax.f32 %v605, 0.0
    %s607 = scalar_lea.vmem [#allocation2], 64
    %v608 = vld [vmem:[%s607] sm:$0xf]
    %v609 = vld [vmem:[%s607 + $0x4] sm:$0xf]
    %v610 = vld [vmem:[%s607 + $0x8] sm:$0xf]
    %v611 = vld [vmem:[%s607 + $0xc] sm:$0xf]
    %v612 = vpack.c.bf16 %v606, %v606
    %v617 = vunpack.c.l.b16 %v608
    %v618 = vunpack.c.l.b16 %v609
    %v619 = vunpack.c.l.b16 %v610
    %v620 = vunpack.c.l.b16 %v611
    %v621 = vpack.c.b16 %v618, %v617
    %v622 = vpack.c.b16 %v620, %v619
    %v626 = vsel %vm149, %v612, 0
    %628 = vmatprep.subr.bf16.mxu0 0
    %629 = vmatpush1.bf16.msra.mxu0 %v621
    %630 = vmatprep.subr.bf16.mxu0 0
    %631 = vmatpush1.bf16.msra.mxu0 %v622
    %632 = vmatprep.subr.bf16.mxu0 0
    %633 = vmatpush1.bf16.msra.mxu0 0
    %634 = vmatprep.subr.bf16.mxu0 0
    %635 = vmatpush1.bf16.msra.mxu0 0
    %636 = vmatprep.subr.bf16.mxu0 0
    %637 = vmatpush1.bf16.msra.mxu0 0
    %638 = vmatprep.subr.bf16.mxu0 0
    %639 = vmatpush1.bf16.msra.mxu0 0
    %640 = vmatprep.subr.bf16.mxu0 0
    %641 = vmatpush1.bf16.msra.mxu0 0
    %642 = vmatprep.subr.bf16.mxu0 0
    %643 = vmatpush1.bf16.msra.mxu0 0
    %644 = vmatprep.subr.bf16.mxu0 0
    %645 = vmatpush1.bf16.msra.mxu0 0
    %646 = vmatprep.subr.bf16.mxu0 0
    %647 = vmatpush1.bf16.msra.mxu0 0
    %648 = vmatprep.subr.bf16.mxu0 0
    %649 = vmatpush1.bf16.msra.mxu0 0
    %650 = vmatprep.subr.bf16.mxu0 0
    %651 = vmatpush1.bf16.msra.mxu0 0
    %652 = vmatprep.subr.bf16.mxu0 0
    %653 = vmatpush1.bf16.msra.mxu0 0
    %654 = vmatprep.subr.bf16.mxu0 0
    %655 = vmatpush1.bf16.msra.mxu0 0
    %656 = vmatprep.subr.bf16.mxu0 0
    %657 = vmatpush1.bf16.msra.mxu0 0
    %658 = vmatprep.subr.bf16.mxu0 0
    %659 = vmatpush1.bf16.msra.mxu0 0
    %660 = vmatprep.mubr.bf16.mxu0 0
    %661 = vmatmul.mubr.bf16.gmra.mrb[0].mxu0 %v626
    %v662 = vpop.f32.mrb[0].mxu0
    %v663 = vadd.f32 0.0, %v662
    %v664 = vpop.f32.mrb[0].mxu0
    %v665 = vpop.f32.mrb[0].mxu0
    %v666 = vpop.f32.mrb[0].mxu0
    %667 = vdwg.mxu0
    %s668 = scalar_lea.vmem %s5, 4
    %v669 = vld [vmem:[%s668] sm:$0x1]
    %s670 = scalar_lea.vmem [#allocation4], 4
    %v671 = vld [vmem:[%s670] sm:$0x1]
    %v672 = vsel %vm149, %v663, 0.0
    %v673 = vrot.slane %v672, 4
    %v674 = vadd.f32 %v672, %v673
    %v675 = vrot.slane %v674, 2
    %v676 = vadd.f32 %v674, %v675
    %v677 = vrot.slane %v676, 1
    %v678 = vadd.f32 %v676, %v677
    %v679 = vmul.f32 %v663, %v663
    %v680 = vsel %vm149, %v679, 0.0
    %v681 = vrot.slane %v680, 4
    %v682 = vadd.f32 %v680, %v681
    %v683 = vrot.slane %v682, 2
    %v684 = vadd.f32 %v682, %v683
    %v685 = vrot.slane %v684, 1
    %v686 = vadd.f32 %v684, %v685
    %v687 = vmul.f32 %v678, 0.125
    %v688 = vmul.f32 %v686, 0.125
    %v689 = vmul.f32 %v687, %v687
    %v690 = vsub.f32 %v688, %v689
    %v691 = vmax.f32 %v690, 0.0
    %v692 = vadd.f32 %v691, 1e-05
    %v693 = vrsqrt.pop %v692
    %v694 = vmul.f32 %v669, %v693
    %v695 = vmul.f32 %v687, %v694
    %v696 = vsub.f32 %v671, %v695
    %v698 = vlaneseq
    %v699 = vshrl.u32 %v698, 7
    %v700 = vsub.s32 0, %v699
    %v701 = vrot.slane %v694, %v700
    %v703 = vmul.f32 %v663, %v701
    %v705 = vlaneseq
    %v706 = vshrl.u32 %v705, 7
    %v707 = vsub.s32 0, %v706
    %v708 = vrot.slane %v696, %v707
    %v710 = vadd.f32 %v703, %v708
    %v711 = vmax.f32 %v710, 0.0
    %v712 = vld [vmem:[%s7] sm:$0xf]
    %v713 = vld [vmem:[%s7 + $0x4] sm:$0xf]
    %v714 = vld [vmem:[%s7 + $0x8] sm:$0xf]
    %v715 = vld [vmem:[%s7 + $0xc] sm:$0xf]
    %v716 = vpack.c.bf16 %v711, %v711
    %v721 = vunpack.c.l.b16 %v712
    %v722 = vunpack.c.l.b16 %v713
    %v723 = vunpack.c.l.b16 %v714
    %v724 = vunpack.c.l.b16 %v715
    %v725 = vpack.c.b16 %v722, %v721
    %v726 = vpack.c.b16 %v724, %v723
    %v730 = vsel %vm149, %v716, 0
    %732 = vmatprep.subr.bf16.mxu0 0
    %733 = vmatpush1.bf16.msra.mxu0 %v725
    %734 = vmatprep.subr.bf16.mxu0 0
    %735 = vmatpush1.bf16.msra.mxu0 %v726
    %736 = vmatprep.subr.bf16.mxu0 0
    %737 = vmatpush1.bf16.msra.mxu0 0
    %738 = vmatprep.subr.bf16.mxu0 0
    %739 = vmatpush1.bf16.msra.mxu0 0
    %740 = vmatprep.subr.bf16.mxu0 0
    %741 = vmatpush1.bf16.msra.mxu0 0
    %742 = vmatprep.subr.bf16.mxu0 0
    %743 = vmatpush1.bf16.msra.mxu0 0
    %744 = vmatprep.subr.bf16.mxu0 0
    %745 = vmatpush1.bf16.msra.mxu0 0
    %746 = vmatprep.subr.bf16.mxu0 0
    %747 = vmatpush1.bf16.msra.mxu0 0
    %748 = vmatprep.subr.bf16.mxu0 0
    %749 = vmatpush1.bf16.msra.mxu0 0
    %750 = vmatprep.subr.bf16.mxu0 0
    %751 = vmatpush1.bf16.msra.mxu0 0
    %752 = vmatprep.subr.bf16.mxu0 0
    %753 = vmatpush1.bf16.msra.mxu0 0
    %754 = vmatprep.subr.bf16.mxu0 0
    %755 = vmatpush1.bf16.msra.mxu0 0
    %756 = vmatprep.subr.bf16.mxu0 0
    %757 = vmatpush1.bf16.msra.mxu0 0
    %758 = vmatprep.subr.bf16.mxu0 0
    %759 = vmatpush1.bf16.msra.mxu0 0
    %760 = vmatprep.subr.bf16.mxu0 0
    %761 = vmatpush1.bf16.msra.mxu0 0
    %762 = vmatprep.subr.bf16.mxu0 0
    %763 = vmatpush1.bf16.msra.mxu0 0
    %764 = vmatprep.mubr.bf16.mxu0 0
    %765 = vmatmul.mubr.bf16.gmra.mrb[0].mxu0 %v730
    %v766 = vpop.f32.mrb[0].mxu0
    %v767 = vadd.f32 0.0, %v766
    %v768 = vpop.f32.mrb[0].mxu0
    %v769 = vpop.f32.mrb[0].mxu0
    %v770 = vpop.f32.mrb[0].mxu0
    %771 = vdwg.mxu0
    %v772 = vld [vmem:[%s8] sm:$0x1]
    %v773 = vld [vmem:[#allocation6] sm:$0x1]
    %v774 = vsel %vm103, %v767, 0.0
    %v775 = vrot.slane %v774, 4
    %v776 = vadd.f32 %v774, %v775
    %v777 = vrot.slane %v776, 2
    %v778 = vadd.f32 %v776, %v777
    %v779 = vrot.slane %v778, 1
    %v780 = vadd.f32 %v778, %v779
    %v781 = vmul.f32 %v767, %v767
    %v782 = vsel %vm103, %v781, 0.0
    %v783 = vrot.slane %v782, 4
    %v784 = vadd.f32 %v782, %v783
    %v785 = vrot.slane %v784, 2
    %v786 = vadd.f32 %v784, %v785
    %v787 = vrot.slane %v786, 1
    %v788 = vadd.f32 %v786, %v787
    %v789 = vmul.f32 %v780, 0.125
    %v790 = vmul.f32 %v788, 0.125
    %v791 = vmul.f32 %v789, %v789
    %v792 = vsub.f32 %v790, %v791
    %v793 = vmax.f32 %v792, 0.0
    %v794 = vadd.f32 %v793, 1e-05
    %v795 = vrsqrt.pop %v794
    %v796 = vmul.f32 %v772, %v795
    %v797 = vmul.f32 %v789, %v796
    %v798 = vsub.f32 %v773, %v797
    %v800 = vlaneseq
    %v801 = vshrl.u32 %v800, 7
    %v802 = vsub.s32 0, %v801
    %v803 = vrot.slane %v796, %v802
    %v805 = vmul.f32 %v767, %v803
    %v807 = vlaneseq
    %v808 = vshrl.u32 %v807, 7
    %v809 = vsub.s32 0, %v808
    %v810 = vrot.slane %v798, %v809
    %v812 = vadd.f32 %v805, %v810
    %v813 = vmax.f32 %v812, 0.0
    %v814 = vld [vmem:[%s10] sm:$0xf]
    %v815 = vld [vmem:[%s10 + $0x4] sm:$0xf]
    %v816 = vpack.c.bf16 %v813, %v813
    %v817 = vld [vmem:[#allocation7] sm:$0x1]
    %v819 = vlaneseq
    %v820 = vshrl.u32 %v819, 7
    %v821 = vsub.s32 0, %v820
    %v822 = vrot.slane %v817, %v821
    %v826 = vunpack.c.l.b16 %v814
    %v827 = vunpack.c.l.b16 %v815
    %v828 = vpack.c.b16 %v827, %v826
    %v831 = vsel %vm103, %v816, 0
    %833 = vmatprep.subr.bf16.mxu0 0
    %834 = vmatpush1.bf16.msra.mxu0 %v828
    %835 = vmatprep.subr.bf16.mxu0 0
    %836 = vmatpush1.bf16.msra.mxu0 0
    %837 = vmatprep.subr.bf16.mxu0 0
    %838 = vmatpush1.bf16.msra.mxu0 0
    %839 = vmatprep.subr.bf16.mxu0 0
    %840 = vmatpush1.bf16.msra.mxu0 0
    %841 = vmatprep.subr.bf16.mxu0 0
    %842 = vmatpush1.bf16.msra.mxu0 0
    %843 = vmatprep.subr.bf16.mxu0 0
    %844 = vmatpush1.bf16.msra.mxu0 0
    %845 = vmatprep.subr.bf16.mxu0 0
    %846 = vmatpush1.bf16.msra.mxu0 0
    %847 = vmatprep.subr.bf16.mxu0 0
    %848 = vmatpush1.bf16.msra.mxu0 0
    %849 = vmatprep.subr.bf16.mxu0 0
    %850 = vmatpush1.bf16.msra.mxu0 0
    %851 = vmatprep.subr.bf16.mxu0 0
    %852 = vmatpush1.bf16.msra.mxu0 0
    %853 = vmatprep.subr.bf16.mxu0 0
    %854 = vmatpush1.bf16.msra.mxu0 0
    %855 = vmatprep.subr.bf16.mxu0 0
    %856 = vmatpush1.bf16.msra.mxu0 0
    %857 = vmatprep.subr.bf16.mxu0 0
    %858 = vmatpush1.bf16.msra.mxu0 0
    %859 = vmatprep.subr.bf16.mxu0 0
    %860 = vmatpush1.bf16.msra.mxu0 0
    %861 = vmatprep.subr.bf16.mxu0 0
    %862 = vmatpush1.bf16.msra.mxu0 0
    %863 = vmatprep.subr.bf16.mxu0 0
    %864 = vmatpush1.bf16.msra.mxu0 0
    %865 = vmatprep.mubr.bf16.mxu0 0
    %866 = vmatmul.mubr.bf16.gmra.mrb[0].mxu0 %v831
    %v867 = vpop.f32.mrb[0].mxu0
    %v868 = vadd.f32 %v822, %v867
    %v869 = vpop.f32.mrb[0].mxu0
    %v870 = vpop.f32.mrb[0].mxu0
    %v871 = vpop.f32.mrb[0].mxu0
    %872 = vdwg.mxu0
    %873 = vst [vmem:[%s12] sm:$0xff] %v868
    // Predicated region
    $region66: #{dnn_forward.1} parent=1 // pred_check
      _
    $region67: #{dnn_forward.1} parent=1 // pred_check_branch
      %875 = sbr.rel (0) target = $region69
    $region68: #{dnn_forward.1} parent=1 // pred_region
      _
    $region69: #{dnn_forward.1} parent=1 // pred_fallthru
      _
    // Predicated region
    $region70: #{dnn_forward.1} parent=1 // pred_check
      _
    $region71: #{dnn_forward.1} parent=1 // pred_check_branch
      %877 = sbr.rel (0) target = $region73
    $region72: #{dnn_forward.1} parent=1 // pred_region
      _
    $region73: #{dnn_forward.1} parent=1 // pred_fallthru
      _
    %878 = vsyncpa [#allocation3], 1
    %879 = vsyncpa [#allocation5], 1
    %880 = vsyncpa [#allocation8], 1

</llo_original>
